<compile_context>
chip_gen: v5e
topology: v5e:2x2
jax: 0.10.0
libtpu: 0.0.40
codegen_flags: <defaults>
</compile_context>

<pallas_src>
import jax
import jax.numpy as jnp
from jax.experimental import pallas as pl
from jax.experimental.pallas import tpu as pltpu

# Small, module-consistent shapes.
B, C, H, W = 2, 4, 16, 16        # input: NCHW (2, 4, 16, 16)
FEAT = 32                        # backbone feature width ("fc.in_features")
NUM_CLASSES = 4                  # rotation classes
KH = KW = 3                      # conv kernel
HW = H * W                       # 256  (128-aligned lane segment per batch)
N_PIX = B * H * W                # 512  (lane axis of the conv activation)
K_IM2COL = KH * KW * C           # 36   (contraction dim of the im2col matmul)


def rotation_net_kernel(patches_ref, convw_ref, headwt_ref, headb_ref,
                        outt_ref, featt_ref):
    """Fused backbone + head, computed in feature-major (lane-dense) layout.

    patches_ref: (K_IM2COL, N_PIX)      bf16  im2col matrix, pixels on lanes
    convw_ref:   (FEAT, K_IM2COL)       bf16  conv weight, (kh,kw,cin) flattened
    headwt_ref:  (FEAT, NUM_CLASSES)    f32   head weight transposed
    headb_ref:   (NUM_CLASSES, 1)       f32   head bias (column)
    outt_ref:    (NUM_CLASSES, B)       f32   logits, transposed
    featt_ref:   (FEAT, B)              f32   pooled features, transposed
    """
    # --- conv3x3 (SAME) as a single lane-dense MXU matmul, f32 accumulation ---
    act = jnp.dot(convw_ref[...], patches_ref[...],
                  preferred_element_type=jnp.float32)          # (FEAT, N_PIX)
    act = jnp.maximum(act, 0.0)                                # ReLU (VPU, f32)

    # --- global average pool: per-batch 128-aligned lane-segment reduce ------
    inv_hw = jnp.float32(1.0 / HW)
    cols = []
    for b in range(B):                                         # B=2, unrolled
        seg = act[:, b * HW:(b + 1) * HW]                      # (FEAT, HW)
        cols.append(jnp.sum(seg, axis=1, keepdims=True) * inv_hw)   # (FEAT, 1)
    feats_t = jnp.concatenate(cols, axis=1)                    # (FEAT, B)
    featt_ref[...] = feats_t

    # --- tiny linear head on the VPU (no second MXU push/drain) --------------
    rows = []
    for n in range(NUM_CLASSES):                               # 4, unrolled
        w_col = headwt_ref[:, n:n + 1]                         # (FEAT, 1)
        rows.append(jnp.sum(feats_t * w_col, axis=0, keepdims=True))  # (1, B)
    outt_ref[...] = jnp.concatenate(rows, axis=0) + headb_ref[...]    # (4, B)


def _prep_inputs(x_nchw, conv_w):
    """Fold NCHW->NHWC transpose + SAME padding + im2col into the jitted prologue."""
    x = jnp.transpose(x_nchw, (0, 2, 3, 1))                    # NCHW -> NHWC
    x_pad = jnp.pad(x, ((0, 0), (1, 1), (1, 1), (0, 0)))       # SAME padding
    cols = []
    for dy in range(KH):
        for dx in range(KW):
            cols.append(x_pad[:, dy:dy + H, dx:dx + W, :].reshape(N_PIX, C))
    patches = jnp.concatenate(cols, axis=1)                    # (N_PIX, K_IM2COL)
    patches_t = patches.T.astype(jnp.bfloat16)                 # (K_IM2COL, N_PIX)

    # PyTorch conv weight (out, in, kh, kw) -> (out, kh, kw, in) -> 2D, tap-major.
    convw_k = jnp.transpose(conv_w, (0, 2, 3, 1)).reshape(FEAT, K_IM2COL)
    convw_k = convw_k.astype(jnp.bfloat16)
    return patches_t, convw_k


@jax.jit
def rotation_net_forward(x_nchw, conv_w, head_w, head_b):
    patches_t, convw_k = _prep_inputs(x_nchw, conv_w)
    headw_t = head_w.T.astype(jnp.float32)                     # (FEAT, 4), keep f32
    headb_col = head_b.reshape(NUM_CLASSES, 1).astype(jnp.float32)

    vmem = pl.BlockSpec(memory_space=pltpu.MemorySpace.VMEM)
    cost = pl.CostEstimate(
        flops=2 * FEAT * K_IM2COL * N_PIX          # conv matmul
              + 2 * FEAT * N_PIX                   # ReLU + pooling adds
              + 2 * B * FEAT * NUM_CLASSES,        # head
        transcendentals=0,
        bytes_accessed=(patches_t.size * 2 + convw_k.size * 2
                        + headw_t.size * 4 + headb_col.size * 4
                        + (NUM_CLASSES * B + FEAT * B) * 4),
    )

    # Single-shot kernel: total resident data << 0.1 MiB, so no grid/pipeline.
    # (If B ever grows, add a grid axis over batch with
    #  dimension_semantics=("parallel",) to use both v7x TensorCores.)
    out_t, feats_t = pl.pallas_call(
        rotation_net_kernel,
        out_shape=(
            jax.ShapeDtypeStruct((NUM_CLASSES, B), jnp.float32),
            jax.ShapeDtypeStruct((FEAT, B), jnp.float32),
        ),
        in_specs=[vmem, vmem, vmem, vmem],
        out_specs=(vmem, vmem),
        cost_estimate=cost,
    )(patches_t, convw_k, headw_t, headb_col)

    # Tiny epilogue transposes (fused by XLA) to match the module's (B, ...) outputs.
    return out_t.T, feats_t.T


def reference_forward(x_nchw, conv_w, head_w, head_b):
    """Pure-JAX reference, numerically matched to the kernel's bf16 MXU operands."""
    x = jnp.transpose(x_nchw, (0, 2, 3, 1))
    w_hwio = jnp.transpose(conv_w, (2, 3, 1, 0))
    x_q = x.astype(jnp.bfloat16).astype(jnp.float32)
    w_q = w_hwio.astype(jnp.bfloat16).astype(jnp.float32)
    y = jax.lax.conv_general_dilated(
        x_q, w_q, window_strides=(1, 1), padding="SAME",
        dimension_numbers=("NHWC", "HWIO", "NHWC"),
        precision=jax.lax.Precision.HIGHEST)
    y = jnp.maximum(y, 0.0)
    feats = jnp.mean(y, axis=(1, 2))
    out = jnp.dot(feats, head_w.T,
                  precision=jax.lax.Precision.HIGHEST) + head_b
    return out, feats


if __name__ == "__main__":
    key = jax.random.PRNGKey(0)
    k_x, k_cw, k_hw, k_hb = jax.random.split(key, 4)

    x = jax.random.normal(k_x, (B, C, H, W), jnp.float32)               # NCHW
    conv_w = 0.1 * jax.random.normal(k_cw, (FEAT, C, KH, KW), jnp.float32)
    head_w = 0.1 * jax.random.normal(k_hw, (NUM_CLASSES, FEAT), jnp.float32)
    head_b = 0.1 * jax.random.normal(k_hb, (NUM_CLASSES,), jnp.float32)

    out, feats = rotation_net_forward(x, conv_w, head_w, head_b)
    jax.block_until_ready((out, feats))

    ref_out, ref_feats = reference_forward(x, conv_w, head_w, head_b)
    assert out.shape == (B, NUM_CLASSES) and feats.shape == (B, FEAT)
    assert jnp.allclose(out, ref_out, rtol=1e-4, atol=1e-4)
    assert jnp.allclose(feats, ref_feats, rtol=1e-4, atol=1e-4)

    print("KERNEL_OK")
</pallas_src>

<mosaic_0001>
module attributes {stable_mosaic.version = 11 : i64} {
  func.func @rotation_net_kernel(%arg0: memref<36x512xbf16, #tpu.memory_space<vmem>>, %arg1: memref<32x36xbf16, #tpu.memory_space<vmem>>, %arg2: memref<32x4xf32, #tpu.memory_space<vmem>>, %arg3: memref<4x1xf32, #tpu.memory_space<vmem>>, %arg4: memref<4x2xf32, #tpu.memory_space<vmem>>, %arg5: memref<32x2xf32, #tpu.memory_space<vmem>>) attributes {dimension_semantics = [], scalar_prefetch = 0 : i64, scratch_operands = 0 : i64, tpu.core_type = #tpu.core_type<tc>} {
    %c0 = arith.constant 0 : index
    %c0_0 = arith.constant 0 : index
    %0 = vector.load %arg1[%c0, %c0_0] : memref<32x36xbf16, #tpu.memory_space<vmem>>, vector<32x36xbf16>
    %c0_1 = arith.constant 0 : index
    %c0_2 = arith.constant 0 : index
    %1 = vector.load %arg0[%c0_1, %c0_2] : memref<36x512xbf16, #tpu.memory_space<vmem>>, vector<36x512xbf16>
    %cst = arith.constant dense<0.000000e+00> : vector<32x512xf32>
    %2 = tpu.matmul %0, %1, %cst {dimension_numbers = #tpu.dot_dimension_numbers<[1], [0], [0], [1], [0, 0, 1, 1], [], []>} : vector<32x36xbf16>, vector<36x512xbf16>, vector<32x512xf32> -> vector<32x512xf32>
    %cst_3 = arith.constant 0.000000e+00 : f32
    %3 = vector.broadcast %cst_3 : f32 to vector<32x512xf32>
    %4 = arith.maximumf %2, %3 : vector<32x512xf32>
    %5 = vector.extract_strided_slice %4 {offsets = [0, 0], sizes = [32, 256], strides = [1, 1]} : vector<32x512xf32> to vector<32x256xf32>
    %cst_4 = arith.constant dense<0.000000e+00> : vector<32xf32>
    %6 = vector.multi_reduction <add>, %5, %cst_4 [1] : vector<32x256xf32> to vector<32xf32>
    %7 = vector.shape_cast %6 : vector<32xf32> to vector<32x1xf32>
    %cst_5 = arith.constant 3.906250e-03 : f32
    %8 = vector.broadcast %cst_5 : f32 to vector<32x1xf32>
    %9 = arith.mulf %7, %8 : vector<32x1xf32>
    %10 = vector.extract_strided_slice %4 {offsets = [0, 256], sizes = [32, 256], strides = [1, 1]} : vector<32x512xf32> to vector<32x256xf32>
    %cst_6 = arith.constant dense<0.000000e+00> : vector<32xf32>
    %11 = vector.multi_reduction <add>, %10, %cst_6 [1] : vector<32x256xf32> to vector<32xf32>
    %12 = vector.shape_cast %11 : vector<32xf32> to vector<32x1xf32>
    %cst_7 = arith.constant 3.906250e-03 : f32
    %13 = vector.broadcast %cst_7 : f32 to vector<32x1xf32>
    %14 = arith.mulf %12, %13 : vector<32x1xf32>
    %15 = tpu.concatenate %9, %14 in 1 : vector<32x1xf32>, vector<32x1xf32> -> vector<32x2xf32>
    %c0_8 = arith.constant 0 : index
    %c0_9 = arith.constant 0 : index
    %16 = vector.load %arg5[%c0_8, %c0_9] : memref<32x2xf32, #tpu.memory_space<vmem>>, vector<32x2xf32>
    tpu.vector_store %arg5[%c0_8, %c0_9], %15 {strides = array<i32>} : memref<32x2xf32, #tpu.memory_space<vmem>>, vector<32x2xf32>,
    %c0_10 = arith.constant 0 : index
    %c0_11 = arith.constant 0 : index
    %17 = vector.load %arg2[%c0_10, %c0_11] : memref<32x4xf32, #tpu.memory_space<vmem>>, vector<32x1xf32>
    %18 = vector.broadcast %17 : vector<32x1xf32> to vector<32x2xf32>
    %19 = arith.mulf %15, %18 : vector<32x2xf32>
    %cst_12 = arith.constant dense<0.000000e+00> : vector<2xf32>
    %20 = vector.multi_reduction <add>, %19, %cst_12 [0] : vector<32x2xf32> to vector<2xf32>
    %21 = vector.shape_cast %20 : vector<2xf32> to vector<1x2xf32>
    %c0_13 = arith.constant 0 : index
    %c1 = arith.constant 1 : index
    %22 = vector.load %arg2[%c0_13, %c1] : memref<32x4xf32, #tpu.memory_space<vmem>>, vector<32x1xf32>
    %23 = vector.broadcast %22 : vector<32x1xf32> to vector<32x2xf32>
    %24 = arith.mulf %15, %23 : vector<32x2xf32>
    %cst_14 = arith.constant dense<0.000000e+00> : vector<2xf32>
    %25 = vector.multi_reduction <add>, %24, %cst_14 [0] : vector<32x2xf32> to vector<2xf32>
    %26 = vector.shape_cast %25 : vector<2xf32> to vector<1x2xf32>
    %c0_15 = arith.constant 0 : index
    %c2 = arith.constant 2 : index
    %27 = vector.load %arg2[%c0_15, %c2] : memref<32x4xf32, #tpu.memory_space<vmem>>, vector<32x1xf32>
    %28 = vector.broadcast %27 : vector<32x1xf32> to vector<32x2xf32>
    %29 = arith.mulf %15, %28 : vector<32x2xf32>
    %cst_16 = arith.constant dense<0.000000e+00> : vector<2xf32>
    %30 = vector.multi_reduction <add>, %29, %cst_16 [0] : vector<32x2xf32> to vector<2xf32>
    %31 = vector.shape_cast %30 : vector<2xf32> to vector<1x2xf32>
    %c0_17 = arith.constant 0 : index
    %c3 = arith.constant 3 : index
    %32 = vector.load %arg2[%c0_17, %c3] : memref<32x4xf32, #tpu.memory_space<vmem>>, vector<32x1xf32>
    %33 = vector.broadcast %32 : vector<32x1xf32> to vector<32x2xf32>
    %34 = arith.mulf %15, %33 : vector<32x2xf32>
    %cst_18 = arith.constant dense<0.000000e+00> : vector<2xf32>
    %35 = vector.multi_reduction <add>, %34, %cst_18 [0] : vector<32x2xf32> to vector<2xf32>
    %36 = vector.shape_cast %35 : vector<2xf32> to vector<1x2xf32>
    %37 = tpu.concatenate %21, %26, %31, %36 in 0 : vector<1x2xf32>, vector<1x2xf32>, vector<1x2xf32>, vector<1x2xf32> -> vector<4x2xf32>
    %c0_19 = arith.constant 0 : index
    %c0_20 = arith.constant 0 : index
    %38 = vector.load %arg3[%c0_19, %c0_20] : memref<4x1xf32, #tpu.memory_space<vmem>>, vector<4x1xf32>
    %39 = vector.broadcast %38 : vector<4x1xf32> to vector<4x2xf32>
    %40 = arith.addf %37, %39 : vector<4x2xf32>
    %c0_21 = arith.constant 0 : index
    %c0_22 = arith.constant 0 : index
    %41 = vector.load %arg4[%c0_21, %c0_22] : memref<4x2xf32, #tpu.memory_space<vmem>>, vector<4x2xf32>
    tpu.vector_store %arg4[%c0_21, %c0_22], %40 {strides = array<i32>} : memref<4x2xf32, #tpu.memory_space<vmem>>, vector<4x2xf32>,
    return
  }
}

</mosaic_0001>

<llo_original>
// kernel: rotation_net_forward.1
$region0: #{rotation_net_forward.1}
  #allocation0 [shape = 'u32[]', space=smem, size = 0x4, offset = 0x4, fixed_abs, tag = 'smem constant byte address 0x4 - core index']
  #allocation1 [shape = 'u32[72,128]{1,0:T(1,128)}', space=vmem, size = 0x9000, scoped, tag = 'internal scratch']
  %s0 = inlined_call_operand.vmem [shape: bf16[36,512], index: 0, kind: input, shape index: {}]
  %s1 = inlined_call_operand.vmem [shape: bf16[32,36], index: 1, kind: input, shape index: {}]
  %s2 = inlined_call_operand.vmem [shape: f32[32,4], index: 2, kind: input, shape index: {}]
  %s3 = inlined_call_operand.vmem [shape: f32[4,1], index: 3, kind: input, shape index: {}]
  %s4 = inlined_call_operand.vmem [shape: f32[4,2], index: 4, kind: output, shape index: {0}]
  %s5 = inlined_call_operand.vmem [shape: f32[32,2], index: 5, kind: output, shape index: {1}]
  %6 = xla_tuple %s4, %s5
  %s7 = sld [smem:[#allocation0]]
  $region34: #{rotation_net_forward.1} parent=0
    _
  %s9 = ssub.s32 1, %s7
  %s10 = scalar_select 0, %s9, %s7
  // Predicated region
  $region2: #{rotation_net_forward.1} parent=0 // pred_check
    _
  $region3: #{rotation_net_forward.1} parent=0 // pred_check_branch
    %12 = sbr.rel (0) target = $region5
  $region4: #{rotation_net_forward.1} parent=0 // pred_region
    _
  $region5: #{rotation_net_forward.1} parent=0 // pred_fallthru
    _
  // Predicated region
  $region6: #{rotation_net_forward.1} parent=0 // pred_check
    _
  $region7: #{rotation_net_forward.1} parent=0 // pred_check_branch
    %14 = sbr.rel (0) target = $region9
  $region8: #{rotation_net_forward.1} parent=0 // pred_region
    _
  $region9: #{rotation_net_forward.1} parent=0 // pred_fallthru
    _
  // Predicated region
  $region10: #{rotation_net_forward.1} parent=0 // pred_check
    _
  $region11: #{rotation_net_forward.1} parent=0 // pred_check_branch
    %16 = sbr.rel (0) target = $region13
  $region12: #{rotation_net_forward.1} parent=0 // pred_region
    _
  $region13: #{rotation_net_forward.1} parent=0 // pred_fallthru
    _
  // Predicated region
  $region14: #{rotation_net_forward.1} parent=0 // pred_check
    _
  $region15: #{rotation_net_forward.1} parent=0 // pred_check_branch
    %18 = sbr.rel (0) target = $region17
  $region16: #{rotation_net_forward.1} parent=0 // pred_region
    _
  $region17: #{rotation_net_forward.1} parent=0 // pred_fallthru
    _
  %v20 = vld [vmem:[%s1] sm:$0xf]
  %v21 = vld [vmem:[%s1 + $0x4] sm:$0xf]
  %v22 = vld [vmem:[%s1 + $0x8] sm:$0xf]
  %v23 = vld [vmem:[%s1 + $0xc] sm:$0xf]
  %v24 = vld [vmem:[%s0] sm:$0xff]
  %v25 = vld [vmem:[%s0 + $0x8] sm:$0xff]
  %v26 = vld [vmem:[%s0 + $0x10] sm:$0xff]
  %v27 = vld [vmem:[%s0 + $0x18] sm:$0xff]
  %v28 = vld [vmem:[%s0 + $0x20] sm:$0xff]
  %v29 = vld [vmem:[%s0 + $0x28] sm:$0xff]
  %v30 = vld [vmem:[%s0 + $0x30] sm:$0xff]
  %v31 = vld [vmem:[%s0 + $0x38] sm:$0xff]
  %v32 = vld [vmem:[%s0 + $0x40] sm:$0x33]
  %v33 = vld [vmem:[%s0 + $0x48] sm:$0x33]
  %v38 = vunpack.c.l.b16 %v20
  %v39 = vunpack.c.l.b16 %v21
  %v40 = vunpack.c.l.b16 %v22
  %v41 = vunpack.c.l.b16 %v23
  %v42 = vpack.c.b16 %v39, %v38
  %v43 = vpack.c.b16 %v41, %v40
  %v54 = vunpack.c.l.b16 %v24
  %v55 = vunpack.c.h.b16 %v24
  %v56 = vunpack.c.l.b16 %v25
  %v57 = vunpack.c.h.b16 %v25
  %v58 = vunpack.c.l.b16 %v26
  %v59 = vunpack.c.h.b16 %v26
  %v60 = vunpack.c.l.b16 %v27
  %v61 = vunpack.c.h.b16 %v27
  %v62 = vunpack.c.l.b16 %v28
  %v63 = vunpack.c.h.b16 %v28
  %v64 = vunpack.c.l.b16 %v29
  %v65 = vunpack.c.h.b16 %v29
  %v66 = vunpack.c.l.b16 %v30
  %v67 = vunpack.c.h.b16 %v30
  %v68 = vunpack.c.l.b16 %v31
  %v69 = vunpack.c.h.b16 %v31
  %v70 = vunpack.c.l.b16 %v32
  %v71 = vunpack.c.h.b16 %v32
  %v72 = vunpack.c.l.b16 %v33
  %v73 = vunpack.c.h.b16 %v33
  %v74 = vpack.c.b16 %v58, %v54
  %v75 = vpack.c.b16 %v59, %v55
  %v76 = vpack.c.b16 %v60, %v56
  %v77 = vpack.c.b16 %v61, %v57
  %v78 = vpack.c.b16 %v66, %v62
  %v79 = vpack.c.b16 %v67, %v63
  %v80 = vpack.c.b16 %v68, %v64
  %v81 = vpack.c.b16 %v69, %v65
  %v82 = vpack.c.b16 %v70, %v70
  %v83 = vpack.c.b16 %v71, %v71
  %v84 = vpack.c.b16 %v72, %v72
  %v85 = vpack.c.b16 %v73, %v73
  %vm94 = vcmask 293888
  %v96 = vsel %vm94, %v42, 0
  %v99 = vsel %vm94, %v43, 0
  %vm101 = vcmask 1041408
  %v103 = vsel %vm101, %v82, 0
  %v106 = vsel %vm101, %v83, 0
  %v109 = vsel %vm101, %v84, 0
  %v112 = vsel %vm101, %v85, 0
  %114 = vmatpush.bf16.msra.mxu0 0
  %115 = vmatpush.bf16.msra.mxu0 0
  %116 = vmatpush.bf16.msra.mxu0 0
  %117 = vmatpush.bf16.msra.mxu0 0
  %118 = vmatpush.bf16.msra.mxu0 0
  %119 = vmatpush.bf16.msra.mxu0 %v103
  %120 = vmatpush.bf16.msra.mxu0 %v78
  %121 = vmatpush.bf16.msra.mxu0 %v74
  %122 = vmatmul.bf16.gmra.mxu0 %v96
  %v123 = vpop.f32.mrf.mxu0
  %v124 = vadd.f32 0.0, %v123
  %v125 = vpop.f32.mrf.mxu0
  %v126 = vadd.f32 0.0, %v125
  %127 = vmatmul.bf16.gmra.mxu0 %v99
  %v128 = vpop.f32.mrf.mxu0
  %v129 = vadd.f32 0.0, %v128
  %v130 = vpop.f32.mrf.mxu0
  %v131 = vadd.f32 0.0, %v130
  %132 = vdwg.mxu0
  %133 = vmatpush.bf16.msra.mxu0 0
  %134 = vmatpush.bf16.msra.mxu0 0
  %135 = vmatpush.bf16.msra.mxu0 0
  %136 = vmatpush.bf16.msra.mxu0 0
  %137 = vmatpush.bf16.msra.mxu0 0
  %138 = vmatpush.bf16.msra.mxu0 %v106
  %139 = vmatpush.bf16.msra.mxu0 %v79
  %140 = vmatpush.bf16.msra.mxu0 %v75
  %141 = vmatmul.bf16.gmra.mxu0 %v96
  %v142 = vpop.f32.mrf.mxu0
  %v143 = vadd.f32 0.0, %v142
  %v144 = vpop.f32.mrf.mxu0
  %v145 = vadd.f32 0.0, %v144
  %146 = vmatmul.bf16.gmra.mxu0 %v99
  %v147 = vpop.f32.mrf.mxu0
  %v148 = vadd.f32 0.0, %v147
  %v149 = vpop.f32.mrf.mxu0
  %v150 = vadd.f32 0.0, %v149
  %151 = vdwg.mxu0
  %152 = vmatpush.bf16.msra.mxu0 0
  %153 = vmatpush.bf16.msra.mxu0 0
  %154 = vmatpush.bf16.msra.mxu0 0
  %155 = vmatpush.bf16.msra.mxu0 0
  %156 = vmatpush.bf16.msra.mxu0 0
  %157 = vmatpush.bf16.msra.mxu0 %v109
  %158 = vmatpush.bf16.msra.mxu0 %v80
  %159 = vmatpush.bf16.msra.mxu0 %v76
  %160 = vmatmul.bf16.gmra.mxu0 %v96
  %v161 = vpop.f32.mrf.mxu0
  %v162 = vadd.f32 0.0, %v161
  %v163 = vpop.f32.mrf.mxu0
  %v164 = vadd.f32 0.0, %v163
  %165 = vmatmul.bf16.gmra.mxu0 %v99
  %v166 = vpop.f32.mrf.mxu0
  %v167 = vadd.f32 0.0, %v166
  %v168 = vpop.f32.mrf.mxu0
  %v169 = vadd.f32 0.0, %v168
  %170 = vdwg.mxu0
  %171 = vmatpush.bf16.msra.mxu0 0
  %172 = vmatpush.bf16.msra.mxu0 0
  %173 = vmatpush.bf16.msra.mxu0 0
  %174 = vmatpush.bf16.msra.mxu0 0
  %175 = vmatpush.bf16.msra.mxu0 0
  %176 = vmatpush.bf16.msra.mxu0 %v112
  %177 = vmatpush.bf16.msra.mxu0 %v81
  %178 = vmatpush.bf16.msra.mxu0 %v77
  %179 = vmatmul.bf16.gmra.mxu0 %v96
  %v180 = vpop.f32.mrf.mxu0
  %v181 = vadd.f32 0.0, %v180
  %v182 = vpop.f32.mrf.mxu0
  %v183 = vadd.f32 0.0, %v182
  %184 = vmatmul.bf16.gmra.mxu0 %v99
  %v185 = vpop.f32.mrf.mxu0
  %v186 = vadd.f32 0.0, %v185
  %v187 = vpop.f32.mrf.mxu0
  %v188 = vadd.f32 0.0, %v187
  %189 = vdwg.mxu0
  %v190 = vmax.f32 %v124, 0.0
  %v191 = vmax.f32 %v143, 0.0
  %v192 = vmax.f32 %v162, 0.0
  %v193 = vmax.f32 %v181, 0.0
  %v194 = vmax.f32 %v126, 0.0
  %v195 = vmax.f32 %v145, 0.0
  %v196 = vmax.f32 %v164, 0.0
  %v197 = vmax.f32 %v183, 0.0
  %v198 = vmax.f32 %v129, 0.0
  %v199 = vmax.f32 %v148, 0.0
  %v200 = vmax.f32 %v167, 0.0
  %v201 = vmax.f32 %v186, 0.0
  %v202 = vmax.f32 %v131, 0.0
  %v203 = vmax.f32 %v150, 0.0
  %v204 = vmax.f32 %v169, 0.0
  %v205 = vmax.f32 %v188, 0.0
  %v206 = vadd.f32 %v190, %v191
  %207 = vadd.xlane.f32.xlu0 %v206
  %v208 = vpop.xlane.xlu0 %207
  %v209 = vadd.f32 %v194, %v195
  %210 = vadd.xlane.f32.xlu0 %v209
  %v211 = vpop.xlane.xlu0 %210
  %v212 = vadd.f32 %v198, %v199
  %213 = vadd.xlane.f32.xlu0 %v212
  %v214 = vpop.xlane.xlu0 %213
  %v215 = vadd.f32 %v202, %v203
  %216 = vadd.xlane.f32.xlu0 %v215
  %v217 = vpop.xlane.xlu0 %216
  %v218 = vmul.f32 %v208, 0.00390625
  %v219 = vmul.f32 %v211, 0.00390625
  %v220 = vmul.f32 %v214, 0.00390625
  %v221 = vmul.f32 %v217, 0.00390625
  %v222 = vadd.f32 %v192, %v193
  %223 = vadd.xlane.f32.xlu0 %v222
  %v224 = vpop.xlane.xlu0 %223
  %v225 = vadd.f32 %v196, %v197
  %226 = vadd.xlane.f32.xlu0 %v225
  %v227 = vpop.xlane.xlu0 %226
  %v228 = vadd.f32 %v200, %v201
  %229 = vadd.xlane.f32.xlu0 %v228
  %v230 = vpop.xlane.xlu0 %229
  %v231 = vadd.f32 %v204, %v205
  %232 = vadd.xlane.f32.xlu0 %v231
  %v233 = vpop.xlane.xlu0 %232
  %v234 = vmul.f32 %v224, 0.00390625
  %v235 = vmul.f32 %v227, 0.00390625
  %v236 = vmul.f32 %v230, 0.00390625
  %v237 = vmul.f32 %v233, 0.00390625
  %vm238 = vcmask 7168
  %v239 = vsel %vm238, %v218, %v234
  %v240 = vsel %vm238, %v219, %v235
  %v241 = vsel %vm238, %v220, %v236
  %v242 = vsel %vm238, %v221, %v237
  %vm243 = vcmask 15360
  %244 = vst.msk [vmem:[%s5] sm:$0xff] %vm243, %v239
  %245 = vst.msk [vmem:[%s5 + $0x8] sm:$0xff] %vm243, %v240
  %246 = vst.msk [vmem:[%s5 + $0x10] sm:$0xff] %vm243, %v241
  %247 = vst.msk [vmem:[%s5 + $0x18] sm:$0xff] %vm243, %v242
  %v248 = vld [vmem:[%s2] sm:$0xff]
  %v249 = vld [vmem:[%s2 + $0x8] sm:$0xff]
  %v250 = vld [vmem:[%s2 + $0x10] sm:$0xff]
  %v251 = vld [vmem:[%s2 + $0x18] sm:$0xff]
  %253 = vset.pattern.permute.xlu0 0
  %254 = vperm.xlu0 %253, %v248
  %v255 = vpop.permute.xlu0 %254
  %258 = vset.pattern.permute.xlu0 0
  %259 = vperm.xlu0 %258, %v249
  %v260 = vpop.permute.xlu0 %259
  %263 = vset.pattern.permute.xlu0 0
  %264 = vperm.xlu0 %263, %v250
  %v265 = vpop.permute.xlu0 %264
  %268 = vset.pattern.permute.xlu0 0
  %269 = vperm.xlu0 %268, %v251
  %v270 = vpop.permute.xlu0 %269
  %v272 = vmul.f32 %v239, %v255
  %v273 = vmul.f32 %v240, %v260
  %v274 = vmul.f32 %v241, %v265
  %v275 = vmul.f32 %v242, %v270
  %v276 = vsel %vm243, %v272, 0.0
  %v277 = vsel %vm243, %v273, 0.0
  %v278 = vadd.f32 %v276, %v277
  %v279 = vsel %vm243, %v274, 0.0
  %v280 = vadd.f32 %v278, %v279
  %v281 = vsel %vm243, %v275, 0.0
  %v282 = vadd.f32 %v280, %v281
  %v283 = vrot.slane %v282, 4
  %v284 = vadd.f32 %v282, %v283
  %v285 = vrot.slane %v284, 2
  %v286 = vadd.f32 %v284, %v285
  %v287 = vrot.slane %v286, 1
  %v288 = vadd.f32 %v286, %v287
  %289 = vset.pattern.permute.xlu0 1
  %290 = vperm.xlu0 %289, %v248
  %v291 = vpop.permute.xlu0 %290
  %293 = vset.pattern.permute.xlu0 1
  %294 = vperm.xlu0 %293, %v249
  %v295 = vpop.permute.xlu0 %294
  %297 = vset.pattern.permute.xlu0 1
  %298 = vperm.xlu0 %297, %v250
  %v299 = vpop.permute.xlu0 %298
  %301 = vset.pattern.permute.xlu0 1
  %302 = vperm.xlu0 %301, %v251
  %v303 = vpop.permute.xlu0 %302
  %v305 = vmul.f32 %v239, %v291
  %v306 = vmul.f32 %v240, %v295
  %v307 = vmul.f32 %v241, %v299
  %v308 = vmul.f32 %v242, %v303
  %v309 = vsel %vm243, %v305, 0.0
  %v310 = vsel %vm243, %v306, 0.0
  %v311 = vadd.f32 %v309, %v310
  %v312 = vsel %vm243, %v307, 0.0
  %v313 = vadd.f32 %v311, %v312
  %v314 = vsel %vm243, %v308, 0.0
  %v315 = vadd.f32 %v313, %v314
  %v316 = vrot.slane %v315, 4
  %v317 = vadd.f32 %v315, %v316
  %v318 = vrot.slane %v317, 2
  %v319 = vadd.f32 %v317, %v318
  %v320 = vrot.slane %v319, 1
  %v321 = vadd.f32 %v319, %v320
  %322 = vset.pattern.permute.xlu0 2
  %323 = vperm.xlu0 %322, %v248
  %v324 = vpop.permute.xlu0 %323
  %326 = vset.pattern.permute.xlu0 2
  %327 = vperm.xlu0 %326, %v249
  %v328 = vpop.permute.xlu0 %327
  %330 = vset.pattern.permute.xlu0 2
  %331 = vperm.xlu0 %330, %v250
  %v332 = vpop.permute.xlu0 %331
  %334 = vset.pattern.permute.xlu0 2
  %335 = vperm.xlu0 %334, %v251
  %v336 = vpop.permute.xlu0 %335
  %v338 = vmul.f32 %v239, %v324
  %v339 = vmul.f32 %v240, %v328
  %v340 = vmul.f32 %v241, %v332
  %v341 = vmul.f32 %v242, %v336
  %v342 = vsel %vm243, %v338, 0.0
  %v343 = vsel %vm243, %v339, 0.0
  %v344 = vadd.f32 %v342, %v343
  %v345 = vsel %vm243, %v340, 0.0
  %v346 = vadd.f32 %v344, %v345
  %v347 = vsel %vm243, %v341, 0.0
  %v348 = vadd.f32 %v346, %v347
  %v349 = vrot.slane %v348, 4
  %v350 = vadd.f32 %v348, %v349
  %v351 = vrot.slane %v350, 2
  %v352 = vadd.f32 %v350, %v351
  %v353 = vrot.slane %v352, 1
  %v354 = vadd.f32 %v352, %v353
  %355 = vset.pattern.permute.xlu0 3
  %356 = vperm.xlu0 %355, %v248
  %v357 = vpop.permute.xlu0 %356
  %359 = vset.pattern.permute.xlu0 3
  %360 = vperm.xlu0 %359, %v249
  %v361 = vpop.permute.xlu0 %360
  %363 = vset.pattern.permute.xlu0 3
  %364 = vperm.xlu0 %363, %v250
  %v365 = vpop.permute.xlu0 %364
  %367 = vset.pattern.permute.xlu0 3
  %368 = vperm.xlu0 %367, %v251
  %v369 = vpop.permute.xlu0 %368
  %v371 = vmul.f32 %v239, %v357
  %v372 = vmul.f32 %v240, %v361
  %v373 = vmul.f32 %v241, %v365
  %v374 = vmul.f32 %v242, %v369
  %v375 = vsel %vm243, %v371, 0.0
  %v376 = vsel %vm243, %v372, 0.0
  %v377 = vadd.f32 %v375, %v376
  %v378 = vsel %vm243, %v373, 0.0
  %v379 = vadd.f32 %v377, %v378
  %v380 = vsel %vm243, %v374, 0.0
  %v381 = vadd.f32 %v379, %v380
  %v382 = vrot.slane %v381, 4
  %v383 = vadd.f32 %v381, %v382
  %v384 = vrot.slane %v383, 2
  %v385 = vadd.f32 %v383, %v384
  %v386 = vrot.slane %v385, 1
  %v387 = vadd.f32 %v385, %v386
  %vm388 = vcmask 1040384
  %v389 = vsel %vm388, %v288, %v321
  %v390 = vsel %vm101, %v389, %v354
  %vm391 = vcmask 1042432
  %v392 = vsel %vm391, %v390, %v387
  %v393 = vld [vmem:[%s3] sm:$0xf]
  %395 = vset.pattern.permute.xlu0 0
  %396 = vperm.xlu0 %395, %v393
  %v397 = vpop.permute.xlu0 %396
  %v399 = vadd.f32 %v392, %v397
  %vm400 = vcmask 11264
  %401 = vst.msk [vmem:[%s4] sm:$0xf] %vm400, %v399
  // Predicated region
  $region18: #{rotation_net_forward.1} parent=0 // pred_check
    _
  $region19: #{rotation_net_forward.1} parent=0 // pred_check_branch
    %403 = sbr.rel (0) target = $region21
  $region20: #{rotation_net_forward.1} parent=0 // pred_region
    _
  $region21: #{rotation_net_forward.1} parent=0 // pred_fallthru
    _
  // Predicated region
  $region22: #{rotation_net_forward.1} parent=0 // pred_check
    _
  $region23: #{rotation_net_forward.1} parent=0 // pred_check_branch
    %405 = sbr.rel (0) target = $region25
  $region24: #{rotation_net_forward.1} parent=0 // pred_region
    _
  $region25: #{rotation_net_forward.1} parent=0 // pred_fallthru
    _
  // Predicated region
  $region26: #{rotation_net_forward.1} parent=0 // pred_check
    _
  $region27: #{rotation_net_forward.1} parent=0 // pred_check_branch
    %407 = sbr.rel (0) target = $region29
  $region28: #{rotation_net_forward.1} parent=0 // pred_region
    _
  $region29: #{rotation_net_forward.1} parent=0 // pred_fallthru
    _
  // Predicated region
  $region30: #{rotation_net_forward.1} parent=0 // pred_check
    _
  $region31: #{rotation_net_forward.1} parent=0 // pred_check_branch
    %409 = sbr.rel (0) target = $region33
  $region32: #{rotation_net_forward.1} parent=0 // pred_region
    _
  $region33: #{rotation_net_forward.1} parent=0 // pred_fallthru
    _

</llo_original>
